<compile_context>
chip_gen: v6e
topology: v6e:2x2x1
jax: 0.10.0
libtpu: 0.0.40
codegen_flags: <defaults>
</compile_context>

<pallas_src>
import jax
import jax.numpy as jnp
from jax.experimental import pallas as pl
from jax.experimental.pallas import tpu as pltpu


# --------------------------------------------------------------------------- #
# Helpers
# --------------------------------------------------------------------------- #
def _round_up(x: int, m: int) -> int:
    return ((x + m - 1) // m) * m


def _vmem_budgets():
    """(tile_budget_bytes, vmem_limit_bytes) from the chip's VMEM capacity."""
    cap = None
    try:
        info = pltpu.get_tpu_info()
        cap = getattr(info, "vmem_capacity_bytes", None)
    except Exception:
        cap = None
    if not cap:
        cap = 64 * 1024 * 1024          # conservative fallback (v7x-sized)
    tile_budget = int(cap * 0.70)       # what the tile chooser may spend
    vmem_limit = int(cap * 0.85)        # explicit scoped-VMEM limit for Mosaic
    return tile_budget, vmem_limit


def _vmem_bytes(tm, tk, K, rank, n_pad, in_isz, out_isz, has_bias, split):
    """Account for every VMEM consumer at a given (tm, tk) choice."""
    r_lane = _round_up(rank, 128)       # rank as a lane (last) dim
    r_sub = _round_up(rank, 8)          # rank as a sublane dim
    x_buf = 2 * tm * tk * in_isz                      # streamed x (double buffer)
    out_buf = 2 * tm * n_pad * out_isz                # streamed out (double buffer)
    rowf = r_sub * n_pad * in_isz                     # resident, single-buffered
    bias = (8 * n_pad * 4) if has_bias else 0         # resident f32
    tmp = tm * n_pad * 4 + tm * r_lane * 4            # f32 matmul temporaries
    if split:
        colf = 2 * tk * r_lane * in_isz               # streamed over K
        acc = tm * r_lane * 4                         # f32 accumulator scratch
    else:
        colf = K * r_lane * in_isz                    # resident, single-buffered
        acc = 0
    return x_buf + out_buf + rowf + bias + tmp + colf + acc


_TM_CANDIDATES = (2048, 1024, 512, 256, 128, 64, 32, 16, 8)


def _choose_tm(M, K, tk, rank, n_pad, in_isz, out_isz, has_bias, split, budget):
    m8 = _round_up(max(M, 1), 8)
    # Keep >= ~4 grid steps along M so v7x's two TensorCores both get work and
    # the DMA pipeline has slack; no-op once VMEM caps tm for large M.
    tm_cap = max(8, _round_up(pl.cdiv(m8, 4), 8))
    tm = 8
    for cand in _TM_CANDIDATES:
        if cand > tm_cap:
            continue
        if _vmem_bytes(cand, tk, K, rank, n_pad, in_isz, out_isz,
                       has_bias, split) <= budget:
            tm = cand
            break
    return tm


def _auto_k_block(K, rank, n_pad, in_isz, out_isz, has_bias, budget,
                  target_tm=512):
    """Split K only if a resident-K block would force tm below target_tm."""
    if _vmem_bytes(target_tm, K, K, rank, n_pad, in_isz, out_isz, has_bias,
                   split=False) <= budget:
        return None
    if K % 128 != 0:
        return None                     # cannot tile cleanly; keep K resident
    q = K // 128
    for d in range(q - 1, 0, -1):       # largest multiple-of-128 divisor of K
        if q % d != 0:
            continue
        tk = 128 * d
        if _vmem_bytes(target_tm, tk, K, rank, n_pad, in_isz, out_isz,
                       has_bias, split=True) <= budget:
            return tk
    return 128


# --------------------------------------------------------------------------- #
# Kernels
# --------------------------------------------------------------------------- #
def _make_fused_kernel(has_bias):
    # (TM,K)@(K,R) -> (TM,R); (TM,R)@(R,Np) -> (TM,Np). Both on MXU, f32 acc.
    # NOTE: h is rounded to the compute dtype between the two matmuls (matches
    # standard bf16 GEMM chains; one extra rounding vs a pure-f32 reference).
    if has_bias:
        def kernel(x_ref, colf_ref, rowf_ref, bias_ref, o_ref):
            h = jnp.dot(x_ref[...], colf_ref[...],
                        preferred_element_type=jnp.float32)
            out = jnp.dot(h.astype(rowf_ref.dtype), rowf_ref[...],
                          preferred_element_type=jnp.float32)
            o_ref[...] = (out + bias_ref[...]).astype(o_ref.dtype)
    else:
        def kernel(x_ref, colf_ref, rowf_ref, o_ref):
            h = jnp.dot(x_ref[...], colf_ref[...],
                        preferred_element_type=jnp.float32)
            out = jnp.dot(h.astype(rowf_ref.dtype), rowf_ref[...],
                          preferred_element_type=jnp.float32)
            o_ref[...] = out.astype(o_ref.dtype)
    return kernel


def _make_ksplit_kernel(has_bias):
    # grid = (M tiles, K tiles); K axis is "arbitrary" with an f32 accumulator.
    def _accumulate(x_ref, colf_ref, acc_ref):
        @pl.when(pl.program_id(1) == 0)
        def _init():
            acc_ref[...] = jnp.zeros_like(acc_ref)
        acc_ref[...] += jnp.dot(x_ref[...], colf_ref[...],
                                preferred_element_type=jnp.float32)

    if has_bias:
        def kernel(x_ref, colf_ref, rowf_ref, bias_ref, o_ref, acc_ref):
            _accumulate(x_ref, colf_ref, acc_ref)

            @pl.when(pl.program_id(1) == pl.num_programs(1) - 1)
            def _finalize():
                out = jnp.dot(acc_ref[...].astype(rowf_ref.dtype), rowf_ref[...],
                              preferred_element_type=jnp.float32)
                o_ref[...] = (out + bias_ref[...]).astype(o_ref.dtype)
    else:
        def kernel(x_ref, colf_ref, rowf_ref, o_ref, acc_ref):
            _accumulate(x_ref, colf_ref, acc_ref)

            @pl.when(pl.program_id(1) == pl.num_programs(1) - 1)
            def _finalize():
                out = jnp.dot(acc_ref[...].astype(rowf_ref.dtype), rowf_ref[...],
                              preferred_element_type=jnp.float32)
                o_ref[...] = out.astype(o_ref.dtype)
    return kernel


# --------------------------------------------------------------------------- #
# Wrapper
# --------------------------------------------------------------------------- #
def prepare_factorized_params(col_factors, row_factors, bias=None,
                              compute_dtype=jnp.bfloat16):
    """One-time weight prep (transpose, cast, lane-pad). Hoist out of the
    per-forward path when the weights are static."""
    rank, in_features = col_factors.shape
    out_features, r2 = row_factors.shape
    assert r2 == rank, "row_factors and col_factors rank mismatch"

    n_pad = _round_up(out_features, 128)
    colf_t = jnp.transpose(col_factors).astype(compute_dtype)     # (K, R)
    rowf_t = jnp.transpose(row_factors).astype(compute_dtype)     # (R, N)
    if n_pad != out_features:
        rowf_t = jnp.pad(rowf_t, ((0, 0), (0, n_pad - out_features)))
    bias2d = None
    if bias is not None:
        bias2d = bias.astype(jnp.float32).reshape(1, out_features)
        if n_pad != out_features:
            bias2d = jnp.pad(bias2d, ((0, 0), (0, n_pad - out_features)))
    return dict(colf_t=colf_t, rowf_t=rowf_t, bias2d=bias2d,
                in_features=in_features, rank=rank,
                out_features=out_features, n_pad=n_pad,
                compute_dtype=compute_dtype)


def factorized_linear_prepared(x, params, *, k_block=None, out_dtype=None):
    K = params["in_features"]
    rank = params["rank"]
    N = params["out_features"]
    n_pad = params["n_pad"]
    cdt = params["compute_dtype"]
    colf_t, rowf_t, bias2d = params["colf_t"], params["rowf_t"], params["bias2d"]
    has_bias = bias2d is not None

    orig_shape = x.shape
    if orig_shape[-1] != K:
        raise ValueError("x last dim does not match in_features")
    if out_dtype is None:
        out_dtype = x.dtype

    x2d = x.reshape(-1, K).astype(cdt)      # cast x + factors to one dtype
    M = x2d.shape[0]
    in_isz = jnp.dtype(cdt).itemsize
    out_isz = jnp.dtype(out_dtype).itemsize

    budget, vmem_limit = _vmem_budgets()

    # Decide K tiling (resident K by default; split only when it would not fit).
    tk = k_block if k_block is not None else _auto_k_block(
        K, rank, n_pad, in_isz, out_isz, has_bias, budget)
    split = tk is not None and tk < K
    if split and (K % tk != 0 or tk % 128 != 0):
        raise ValueError("k_block must be a multiple of 128 that divides in_features")
    if not split:
        tk = K

    tm = _choose_tm(M, K, tk, rank, n_pad, in_isz, out_isz, has_bias, split, budget)
    grid_m = pl.cdiv(M, tm)                 # no jnp.pad of x; edge block is masked

    flops = 2 * M * (K * rank + rank * n_pad)
    bytes_accessed = int(M * K * in_isz
                         + (grid_m if split else 1) * K * rank * in_isz
                         + rank * n_pad * in_isz
                         + (n_pad * 4 if has_bias else 0)
                         + M * n_pad * out_isz)
    cost = pl.CostEstimate(flops=flops, transcendentals=0,
                           bytes_accessed=bytes_accessed)

    def run(weight_mode):
        def wspec(shape, index_map):
            if weight_mode is None:
                return pl.BlockSpec(shape, index_map)
            return pl.BlockSpec(shape, index_map, pipeline_mode=weight_mode)

        if not split:
            grid = (grid_m,)
            in_specs = [
                pl.BlockSpec((tm, K), lambda i: (i, 0)),          # streamed rows
                wspec((K, rank), lambda i: (0, 0)),               # resident weight
                wspec((rank, n_pad), lambda i: (0, 0)),           # resident weight
            ]
            operands = [x2d, colf_t, rowf_t]
            if has_bias:
                in_specs.append(wspec((1, n_pad), lambda i: (0, 0)))
                operands.append(bias2d)
            out_specs = pl.BlockSpec((tm, n_pad), lambda i: (i, 0))
            scratch = []
            dims = ("parallel",)
            kernel = _make_fused_kernel(has_bias)
        else:
            grid = (grid_m, K // tk)
            in_specs = [
                pl.BlockSpec((tm, tk), lambda i, k: (i, k)),      # streamed rows
                pl.BlockSpec((tk, rank), lambda i, k: (k, 0)),    # streamed over K
                wspec((rank, n_pad), lambda i, k: (0, 0)),        # resident weight
            ]
            operands = [x2d, colf_t, rowf_t]
            if has_bias:
                in_specs.append(wspec((1, n_pad), lambda i, k: (0, 0)))
                operands.append(bias2d)
            out_specs = pl.BlockSpec((tm, n_pad), lambda i, k: (i, 0))
            scratch = [pltpu.VMEM((tm, rank), jnp.float32)]       # f32 accumulator
            dims = ("parallel", "arbitrary")
            kernel = _make_ksplit_kernel(has_bias)

        return pl.pallas_call(
            kernel,
            out_shape=jax.ShapeDtypeStruct((M, n_pad), out_dtype),
            grid=grid,
            in_specs=in_specs,
            out_specs=out_specs,
            scratch_shapes=scratch,
            compiler_params=pltpu.CompilerParams(
                dimension_semantics=dims, vmem_limit_bytes=vmem_limit),
            cost_estimate=cost,
        )(*operands)

    try:
        # Single-buffer the resident (constant-index) weights/bias: they are
        # DMA'd once and reused every step, so the second buffer is pure waste.
        out2d = run(pl.Buffered(1))
    except Exception:
        # TODO(synk): this jax build rejected Buffered(1); fall back to default
        # double-buffered resident weights (costs VMEM only, not correctness).
        out2d = run(None)

    if n_pad != N:
        out2d = out2d[:, :N]
    return out2d.reshape(*orig_shape[:-1], N)


def factorized_linear(x, col_factors, row_factors, bias=None, *,
                      compute_dtype=jnp.bfloat16, k_block=None, out_dtype=None):
    """Pallas equivalent of FactorizedLinear.forward.

    x:           (..., in_features)
    col_factors: (rank, in_features)
    row_factors: (out_features, rank)
    bias:        (out_features,) or None
    compute_dtype: streaming/MXU dtype (bf16 default for bandwidth; use
                   jnp.float32 for bit-closer-to-PyTorch numerics).
    """
    params = prepare_factorized_params(col_factors, row_factors, bias,
                                       compute_dtype=compute_dtype)
    return factorized_linear_prepared(x, params, k_block=k_block,
                                      out_dtype=out_dtype)


# --------------------------------------------------------------------------- #
# Self-test
# --------------------------------------------------------------------------- #
if __name__ == "__main__":
    # Deterministic synthetic parameters (module __init__ takes raw tensors).
    batch, seq, in_features, rank, out_features = 2, 8, 32, 8, 16

    key = jax.random.PRNGKey(0)
    k_x, k_col, k_row, k_b = jax.random.split(key, 4)
    x = jax.random.normal(k_x, (batch, seq, in_features), dtype=jnp.float32)
    col_factors = jax.random.normal(k_col, (rank, in_features), jnp.float32) * 0.1
    row_factors = jax.random.normal(k_row, (out_features, rank), jnp.float32) * 0.1
    bias = jax.random.normal(k_b, (out_features,), jnp.float32) * 0.1

    ref = (x @ col_factors.T) @ row_factors.T + bias

    # 1) f32-streaming path (matches the PyTorch f32 module tightly).
    out_f32 = factorized_linear(x, col_factors, row_factors, bias,
                                compute_dtype=jnp.float32)
    out_f32 = jax.block_until_ready(out_f32)
    assert out_f32.shape == (batch, seq, out_features)
    assert jnp.allclose(out_f32, ref, atol=1e-4, rtol=1e-4)

    # 2) Default bf16-streaming path via hoisted/prepared weights.
    #    Looser tolerance: one extra bf16 rounding of the rank intermediate.
    prepared = prepare_factorized_params(col_factors, row_factors, bias)
    out_bf16 = jax.block_until_ready(factorized_linear_prepared(x, prepared))
    assert out_bf16.shape == (batch, seq, out_features)
    assert jnp.allclose(out_bf16, ref, atol=3e-2, rtol=3e-2)

    # 3) No-bias path (separate kernel, no zero-bias DMA / VPU add).
    ref_nb = (x @ col_factors.T) @ row_factors.T
    out_nb = jax.block_until_ready(
        factorized_linear(x, col_factors, row_factors, None,
                          compute_dtype=jnp.float32))
    assert jnp.allclose(out_nb, ref_nb, atol=1e-4, rtol=1e-4)

    # 4) K-split path (forced small k_block so the reduction-grid kernel with
    #    the f32 accumulator + pl.when init/finalize is exercised).
    in2, rank2, out2 = 256, 16, 128
    k_x2, k_col2, k_row2, k_b2 = jax.random.split(jax.random.PRNGKey(1), 4)
    x2 = jax.random.normal(k_x2, (batch, seq, in2), jnp.float32)
    col2 = jax.random.normal(k_col2, (rank2, in2), jnp.float32) * 0.05
    row2 = jax.random.normal(k_row2, (out2, rank2), jnp.float32) * 0.05
    b2 = jax.random.normal(k_b2, (out2,), jnp.float32) * 0.05
    ref2 = (x2 @ col2.T) @ row2.T + b2
    out_split = jax.block_until_ready(
        factorized_linear(x2, col2, row2, b2,
                          compute_dtype=jnp.float32, k_block=128))
    assert out_split.shape == (batch, seq, out2)
    assert jnp.allclose(out_split, ref2, atol=2e-3, rtol=2e-3)

    print("KERNEL_OK")
</pallas_src>

<mosaic_0001>
module attributes {stable_mosaic.version = 11 : i64} {
  func.func @kernel(%arg0: i32, %arg1: memref<8x32xf32, #tpu.memory_space<vmem>>, %arg2: memref<32x8xf32, #tpu.memory_space<vmem>>, %arg3: memref<8x128xf32, #tpu.memory_space<vmem>>, %arg4: memref<1x128xf32, #tpu.memory_space<vmem>>, %arg5: memref<8x128xf32, #tpu.memory_space<vmem>>) attributes {dimension_semantics = [#tpu.dimension_semantics<parallel>], iteration_bounds = array<i64: 2>, scalar_prefetch = 0 : i64, scratch_operands = 0 : i64, tpu.core_type = #tpu.core_type<tc>, window_params = [{transform_indices = @transform_0, window_bounds = array<i64: 8, 32>}, {pipeline_mode = #tpu.pipeline_mode<synchronous>, transform_indices = @transform_1, window_bounds = array<i64: 32, 8>}, {pipeline_mode = #tpu.pipeline_mode<synchronous>, transform_indices = @transform_2, window_bounds = array<i64: 8, 128>}, {pipeline_mode = #tpu.pipeline_mode<synchronous>, transform_indices = @transform_3, window_bounds = array<i64: 1, 128>}, {transform_indices = @transform_4, window_bounds = array<i64: 8, 128>}]} {
    %c0 = arith.constant 0 : index
    %c0_0 = arith.constant 0 : index
    %0 = vector.load %arg1[%c0, %c0_0] : memref<8x32xf32, #tpu.memory_space<vmem>>, vector<8x32xf32>
    %c0_1 = arith.constant 0 : index
    %c0_2 = arith.constant 0 : index
    %1 = vector.load %arg2[%c0_1, %c0_2] : memref<32x8xf32, #tpu.memory_space<vmem>>, vector<32x8xf32>
    %cst = arith.constant dense<0.000000e+00> : vector<8x8xf32>
    %2 = tpu.matmul %0, %1, %cst {dimension_numbers = #tpu.dot_dimension_numbers<[1], [0], [0], [1], [0, 0, 1, 1], [], []>} : vector<8x32xf32>, vector<32x8xf32>, vector<8x8xf32> -> vector<8x8xf32>
    %c0_3 = arith.constant 0 : index
    %c0_4 = arith.constant 0 : index
    %3 = vector.load %arg3[%c0_3, %c0_4] : memref<8x128xf32, #tpu.memory_space<vmem>>, vector<8x128xf32>
    %cst_5 = arith.constant dense<0.000000e+00> : vector<8x128xf32>
    %4 = tpu.matmul %2, %3, %cst_5 {dimension_numbers = #tpu.dot_dimension_numbers<[1], [0], [0], [1], [0, 0, 1, 1], [], []>} : vector<8x8xf32>, vector<8x128xf32>, vector<8x128xf32> -> vector<8x128xf32>
    %c0_6 = arith.constant 0 : index
    %c0_7 = arith.constant 0 : index
    %5 = vector.load %arg4[%c0_6, %c0_7] : memref<1x128xf32, #tpu.memory_space<vmem>>, vector<1x128xf32>
    %6 = vector.broadcast %5 : vector<1x128xf32> to vector<8x128xf32>
    %7 = arith.addf %4, %6 : vector<8x128xf32>
    %c0_8 = arith.constant 0 : index
    %c0_9 = arith.constant 0 : index
    %8 = vector.load %arg5[%c0_8, %c0_9] : memref<8x128xf32, #tpu.memory_space<vmem>>, vector<8x128xf32>
    tpu.vector_store %arg5[%c0_8, %c0_9], %7 {strides = array<i32>} : memref<8x128xf32, #tpu.memory_space<vmem>>, vector<8x128xf32>,
    return
  }
  func.func @transform_0(%arg0: i32) -> (i32, i32) {
    %c0_i32 = arith.constant 0 : i32
    %c0_i32_0 = arith.constant 0 : i32
    return %arg0, %c0_i32 : i32, i32
  }
  func.func @transform_1(%arg0: i32) -> (i32, i32) {
    %c0_i32 = arith.constant 0 : i32
    %c0_i32_0 = arith.constant 0 : i32
    %c0_i32_1 = arith.constant 0 : i32
    return %c0_i32, %c0_i32_0 : i32, i32
  }
  func.func @transform_2(%arg0: i32) -> (i32, i32) {
    %c0_i32 = arith.constant 0 : i32
    %c0_i32_0 = arith.constant 0 : i32
    %c0_i32_1 = arith.constant 0 : i32
    return %c0_i32, %c0_i32_0 : i32, i32
  }
  func.func @transform_3(%arg0: i32) -> (i32, i32) {
    %c0_i32 = arith.constant 0 : i32
    %c0_i32_0 = arith.constant 0 : i32
    %c0_i32_1 = arith.constant 0 : i32
    return %c0_i32, %c0_i32_0 : i32, i32
  }
  func.func @transform_4(%arg0: i32) -> (i32, i32) {
    %c0_i32 = arith.constant 0 : i32
    %c0_i32_0 = arith.constant 0 : i32
    return %arg0, %c0_i32 : i32, i32
  }
}

module attributes {stable_mosaic.version = 11 : i64} {
  func.func @kernel(%arg0: i32, %arg1: memref<8x32xf32, #tpu.memory_space<vmem>>, %arg2: memref<32x8xf32, #tpu.memory_space<vmem>>, %arg3: memref<8x128xf32, #tpu.memory_space<vmem>>, %arg4: memref<1x128xf32, #tpu.memory_space<vmem>>, %arg5: memref<8x128xf32, #tpu.memory_space<vmem>>) attributes {dimension_semantics = [#tpu.dimension_semantics<parallel>], iteration_bounds = array<i64: 2>, scalar_prefetch = 0 : i64, scratch_operands = 0 : i64, tpu.core_type = #tpu.core_type<tc>, window_params = [{transform_indices = @transform_0, window_bounds = array<i64: 8, 32>}, {pipeline_mode = #tpu.pipeline_mode<synchronous>, transform_indices = @transform_1, window_bounds = array<i64: 32, 8>}, {pipeline_mode = #tpu.pipeline_mode<synchronous>, transform_indices = @transform_2, window_bounds = array<i64: 8, 128>}, {pipeline_mode = #tpu.pipeline_mode<synchronous>, transform_indices = @transform_3, window_bounds = array<i64: 1, 128>}, {transform_indices = @transform_4, window_bounds = array<i64: 8, 128>}]} {
    %c0 = arith.constant 0 : index
    %c0_0 = arith.constant 0 : index
    %0 = vector.load %arg1[%c0, %c0_0] : memref<8x32xf32, #tpu.memory_space<vmem>>, vector<8x32xf32>
    %c0_1 = arith.constant 0 : index
    %c0_2 = arith.constant 0 : index
    %1 = vector.load %arg2[%c0_1, %c0_2] : memref<32x8xf32, #tpu.memory_space<vmem>>, vector<32x8xf32>
    %cst = arith.constant dense<0.000000e+00> : vector<8x8xf32>
    %2 = tpu.matmul %0, %1, %cst {dimension_numbers = #tpu.dot_dimension_numbers<[1], [0], [0], [1], [0, 0, 1, 1], [], []>} : vector<8x32xf32>, vector<32x8xf32>, vector<8x8xf32> -> vector<8x8xf32>
    %c0_3 = arith.constant 0 : index
    %c0_4 = arith.constant 0 : index
    %3 = vector.load %arg3[%c0_3, %c0_4] : memref<8x128xf32, #tpu.memory_space<vmem>>, vector<8x128xf32>
    %cst_5 = arith.constant dense<0.000000e+00> : vector<8x128xf32>
    %4 = tpu.matmul %2, %3, %cst_5 {dimension_numbers = #tpu.dot_dimension_numbers<[1], [0], [0], [1], [0, 0, 1, 1], [], []>} : vector<8x8xf32>, vector<8x128xf32>, vector<8x128xf32> -> vector<8x128xf32>
    %c0_6 = arith.constant 0 : index
    %c0_7 = arith.constant 0 : index
    %5 = vector.load %arg4[%c0_6, %c0_7] : memref<1x128xf32, #tpu.memory_space<vmem>>, vector<1x128xf32>
    %6 = vector.broadcast %5 : vector<1x128xf32> to vector<8x128xf32>
    %7 = arith.addf %4, %6 : vector<8x128xf32>
    %c0_8 = arith.constant 0 : index
    %c0_9 = arith.constant 0 : index
    %8 = vector.load %arg5[%c0_8, %c0_9] : memref<8x128xf32, #tpu.memory_space<vmem>>, vector<8x128xf32>
    tpu.vector_store %arg5[%c0_8, %c0_9], %7 {strides = array<i32>} : memref<8x128xf32, #tpu.memory_space<vmem>>, vector<8x128xf32>,
    return
  }
  func.func @transform_0(%arg0: i32) -> (i32, i32) {
    %c0_i32 = arith.constant 0 : i32
    %c0_i32_0 = arith.constant 0 : i32
    return %arg0, %c0_i32 : i32, i32
  }
  func.func @transform_1(%arg0: i32) -> (i32, i32) {
    %c0_i32 = arith.constant 0 : i32
    %c0_i32_0 = arith.constant 0 : i32
    %c0_i32_1 = arith.constant 0 : i32
    return %c0_i32, %c0_i32_0 : i32, i32
  }
  func.func @transform_2(%arg0: i32) -> (i32, i32) {
    %c0_i32 = arith.constant 0 : i32
    %c0_i32_0 = arith.constant 0 : i32
    %c0_i32_1 = arith.constant 0 : i32
    return %c0_i32, %c0_i32_0 : i32, i32
  }
  func.func @transform_3(%arg0: i32) -> (i32, i32) {
    %c0_i32 = arith.constant 0 : i32
    %c0_i32_0 = arith.constant 0 : i32
    %c0_i32_1 = arith.constant 0 : i32
    return %c0_i32, %c0_i32_0 : i32, i32
  }
  func.func @transform_4(%arg0: i32) -> (i32, i32) {
    %c0_i32 = arith.constant 0 : i32
    %c0_i32_0 = arith.constant 0 : i32
    return %arg0, %c0_i32 : i32, i32
  }
}

</mosaic_0001>

<llo_original>
// kernel: tpu_custom_call.1
$region0: #{tpu_custom_call.1}
  #allocation0 [shape = 'u32[]', space=smem, size = 0x4, offset = 0x4, fixed_abs, tag = 'smem constant byte address 0x4 - core index']
  #allocation1 [shape = 'u32[144,128]{1,0:T(1,128)}', space=vmem, size = 0x12000, scoped, tag = 'internal scratch']
  %s0 = inlined_call_operand.vmem [shape: f32[16,32], index: 0, kind: input, shape index: {}]
  %s1 = inlined_call_operand.vmem [shape: f32[32,8], index: 1, kind: input, shape index: {}]
  %s2 = inlined_call_operand.vmem [shape: f32[8,128], index: 2, kind: input, shape index: {}]
  %s3 = inlined_call_operand.vmem [shape: f32[1,128], index: 3, kind: input, shape index: {}]
  %s4 = inlined_call_operand.hbm [shape: f32[16,128], index: 4, kind: output, shape index: {}]
  %s5 = sld [smem:[#allocation0]]
  $region49: #{tpu_custom_call.1} parent=0
    _
  %s7 = ssub.s32 1, %s5
  %s8 = scalar_select 0, %s7, %s5
  $region1: #{tpu_custom_call.1} parent=0
    #allocation2 [shape = 'u8[8192]{0}', space=vmem, size = 0x2000, scoped, tag = 'output window, operand 0']
    #allocation3 [shape = 's32[2]{0}', space=sflag, size = 0x8, scoped, tag = 'scoped memory for tpu_custom_call.1']
    %9 = vsyncpa [#allocation3], 0
    %s10 = scalar_lea.sflag [#allocation3], 1
    %11 = vsyncpa %s10, 0
    loop: start=0, step=1, limit=4
    $region2: #{tpu_custom_call.1} parent=1 // loop_pre_header
      _
    $region3: #{tpu_custom_call.1} parent=1 // loop_header
      %s13 = sphi 0, %s17
      %p14 = scmp.ge.s32.totalorder %s13, 4
      %s23 = sphi 0, %s25
      %s26 = sphi 0, %s23
      %s27 = sphi 0, %s26
      %s43 = sphi 0, %s27
      %s47 = sphi 0, %s47
      %s49 = sphi 0, %s47
      %s50 = sphi 0, %s49
      %s64 = sphi 0, %s50
      %s68 = sphi 0, %s68
      %s70 = sphi 0, %s68
      %s71 = sphi 0, %s70
      %s85 = sphi 0, %s71
      %s89 = sphi 0, %s89
      %s91 = sphi 0, %s89
      %s92 = sphi 0, %s91
      %s106 = sphi 0, %s92
      %s112 = sphi 0, %s114
      %s115 = sphi 0, %s112
      %s116 = sphi 0, %s115
      %s132 = sphi 0, %s116
    $region4: #{tpu_custom_call.1} parent=1 // loop_header_branch
      %16 = sbr.rel (%p14) target = $region8
    $region5: #{tpu_custom_call.1} parent=1 // loop_body
      %s18 = ssub.s32 %s13, 1
      %s19 = ssub.s32 %s13, 2
      %s20 = sadd.s32 %s13, 1
      %s21 = ssub.s32 %s13, %s20
      %p22 = scmp.eq.s32.totalorder %s21, 0
      %s24 = sadd.s32 %s23, 1
      %s25 = scalar_select %p22, %s23, %s24
      %p28 = pneg %p22
      %p29 = scmp.eq.s32.totalorder %s13, 1
      %p30 = por %p28, %p29
      %p31 = scmp.ne.s32.totalorder %s23, %s26
      %p32 = scmp.eq.s32.totalorder %s13, 0
      %p33 = por %p31, %p32
      %p34 = scmp.ne.s32.totalorder %s23, %s26
      %p35 = scmp.eq.s32.totalorder %s18, 1
      %p36 = por %p34, %p35
      %p37 = scmp.ne.s32.totalorder %s26, %s27
      %p38 = scmp.eq.s32.totalorder %s18, 0
      %p39 = por %p37, %p38
      %p40 = scmp.ne.s32.totalorder %s26, %s27
      %p41 = scmp.eq.s32.totalorder %s19, 1
      %p42 = por %p40, %p41
      %p44 = scmp.ne.s32.totalorder %s27, %s43
      %p45 = scmp.eq.s32.totalorder %s19, 0
      %p46 = por %p44, %p45
      %s48 = sadd.s32 %s47, 1
      %p51 = scmp.eq.s32.totalorder %s13, 1
      %p52 = scmp.ne.s32.totalorder %s47, %s49
      %p53 = scmp.eq.s32.totalorder %s13, 0
      %p54 = por %p52, %p53
      %p55 = scmp.ne.s32.totalorder %s47, %s49
      %p56 = scmp.eq.s32.totalorder %s18, 1
      %p57 = por %p55, %p56
      %p58 = scmp.ne.s32.totalorder %s49, %s50
      %p59 = scmp.eq.s32.totalorder %s18, 0
      %p60 = por %p58, %p59
      %p61 = scmp.ne.s32.totalorder %s49, %s50
      %p62 = scmp.eq.s32.totalorder %s19, 1
      %p63 = por %p61, %p62
      %p65 = scmp.ne.s32.totalorder %s50, %s64
      %p66 = scmp.eq.s32.totalorder %s19, 0
      %p67 = por %p65, %p66
      %s69 = sadd.s32 %s68, 1
      %p72 = scmp.eq.s32.totalorder %s13, 1
      %p73 = scmp.ne.s32.totalorder %s68, %s70
      %p74 = scmp.eq.s32.totalorder %s13, 0
      %p75 = por %p73, %p74
      %p76 = scmp.ne.s32.totalorder %s68, %s70
      %p77 = scmp.eq.s32.totalorder %s18, 1
      %p78 = por %p76, %p77
      %p79 = scmp.ne.s32.totalorder %s70, %s71
      %p80 = scmp.eq.s32.totalorder %s18, 0
      %p81 = por %p79, %p80
      %p82 = scmp.ne.s32.totalorder %s70, %s71
      %p83 = scmp.eq.s32.totalorder %s19, 1
      %p84 = por %p82, %p83
      %p86 = scmp.ne.s32.totalorder %s71, %s85
      %p87 = scmp.eq.s32.totalorder %s19, 0
      %p88 = por %p86, %p87
      %s90 = sadd.s32 %s89, 1
      %p93 = scmp.eq.s32.totalorder %s13, 1
      %p94 = scmp.ne.s32.totalorder %s89, %s91
      %p95 = scmp.eq.s32.totalorder %s13, 0
      %p96 = por %p94, %p95
      %p97 = scmp.ne.s32.totalorder %s89, %s91
      %p98 = scmp.eq.s32.totalorder %s18, 1
      %p99 = por %p97, %p98
      %p100 = scmp.ne.s32.totalorder %s91, %s92
      %p101 = scmp.eq.s32.totalorder %s18, 0
      %p102 = por %p100, %p101
      %p103 = scmp.ne.s32.totalorder %s91, %s92
      %p104 = scmp.eq.s32.totalorder %s19, 1
      %p105 = por %p103, %p104
      %p107 = scmp.ne.s32.totalorder %s92, %s106
      %p108 = scmp.eq.s32.totalorder %s19, 0
      %p109 = por %p107, %p108
      %s110 = ssub.s32 %s13, %s20
      %p111 = scmp.eq.s32.totalorder %s110, 0
      %s113 = sadd.s32 %s112, 1
      %s114 = scalar_select %p111, %s112, %s113
      %p117 = pneg %p111
      %p118 = scmp.eq.s32.totalorder %s13, 1
      %p119 = por %p117, %p118
      %p120 = scmp.ne.s32.totalorder %s112, %s115
      %p121 = scmp.eq.s32.totalorder %s13, 0
      %p122 = por %p120, %p121
      %p123 = scmp.ne.s32.totalorder %s112, %s115
      %p124 = scmp.eq.s32.totalorder %s18, 1
      %p125 = por %p123, %p124
      %p126 = scmp.ne.s32.totalorder %s115, %s116
      %p127 = scmp.eq.s32.totalorder %s18, 0
      %p128 = por %p126, %p127
      %p129 = scmp.ne.s32.totalorder %s115, %s116
      %p130 = scmp.eq.s32.totalorder %s19, 1
      %p131 = por %p129, %p130
      %p133 = scmp.ne.s32.totalorder %s116, %s132
      %p134 = scmp.eq.s32.totalorder %s19, 0
      %p135 = por %p133, %p134
      %p136 = scmp.le.s32.totalorder 1, %s13
      %p137 = scmp.lt.s32.totalorder %s13, 3
      %p138 = pnand %p136, %p137
      %p139 = pneg %p138
      // Predicated region
      $region9: #{tpu_custom_call.1} parent=5 // pred_check
        _
      $region10: #{tpu_custom_call.1} parent=5 // pred_check_branch
        %141 = sbr.rel (%p138) target = $region12
      $region11: #{tpu_custom_call.1} parent=5 // pred_region
        %s142 = ssub.s32 %s13, 1
        // Predicated region
        $region13: #{tpu_custom_call.1} parent=11 // pred_check
          %p143 = pneg %p60
        $region14: #{tpu_custom_call.1} parent=11 // pred_check_branch
          %145 = sbr.rel (%p143) target = $region16
        $region15: #{tpu_custom_call.1} parent=11 // pred_region
          _
        $region16: #{tpu_custom_call.1} parent=11 // pred_fallthru
          _
        // Predicated region
        $region17: #{tpu_custom_call.1} parent=11 // pred_check
          %p146 = pneg %p81
        $region18: #{tpu_custom_call.1} parent=11 // pred_check_branch
          %148 = sbr.rel (%p146) target = $region20
        $region19: #{tpu_custom_call.1} parent=11 // pred_region
          _
        $region20: #{tpu_custom_call.1} parent=11 // pred_fallthru
          _
        // Predicated region
        $region21: #{tpu_custom_call.1} parent=11 // pred_check
          %p149 = pneg %p102
        $region22: #{tpu_custom_call.1} parent=11 // pred_check_branch
          %151 = sbr.rel (%p149) target = $region24
        $region23: #{tpu_custom_call.1} parent=11 // pred_region
          _
        $region24: #{tpu_custom_call.1} parent=11 // pred_fallthru
          _
      $region12: #{tpu_custom_call.1} parent=5 // pred_fallthru
        _
      %p152 = scmp.lt.s32.totalorder %s13, 2
      // Predicated region
      $region25: #{tpu_custom_call.1} parent=5 // pred_check
        %p153 = pneg %p152
      $region26: #{tpu_custom_call.1} parent=5 // pred_check_branch
        %155 = sbr.rel (%p153) target = $region28
      $region27: #{tpu_custom_call.1} parent=5 // pred_region
        // Predicated region
        $region29: #{tpu_custom_call.1} parent=27 // pred_check
          %p156 = pneg %p33
        $region30: #{tpu_custom_call.1} parent=27 // pred_check_branch
          %158 = sbr.rel (%p156) target = $region32
        $region31: #{tpu_custom_call.1} parent=27 // pred_region
          %p159 = scmp.lt.s32.totalorder %s13, 1
          %s160 = scalar_select %p159, %s13, 1
          %s161 = smul.addr %s160, 8
          %s162 = scalar_lea.vmem %s0, %s161
        $region32: #{tpu_custom_call.1} parent=27 // pred_fallthru
          _
      $region28: #{tpu_custom_call.1} parent=5 // pred_fallthru
        _
      %p163 = scmp.le.s32.totalorder 1, %s13
      %p164 = scmp.lt.s32.totalorder %s13, 3
      %p165 = pnand %p163, %p164
      %p166 = pneg %p165
      // Predicated region
      $region33: #{tpu_custom_call.1} parent=5 // pred_check
        _
      $region34: #{tpu_custom_call.1} parent=5 // pred_check_branch
        %168 = sbr.rel (%p165) target = $region36
      $region35: #{tpu_custom_call.1} parent=5 // pred_region
        %s169 = ssub.s32 %s13, 1
        %p170 = scmp.lt.s32.totalorder %s18, 1
        %s171 = scalar_select %p170, %s18, 1
        %s172 = smul.addr %s171, 8
        %s173 = scalar_lea.vmem %s0, %s172
        %p174 = pneg %p39
        %p175 = pneg %p36
        %p176 = pneg %p60
        %p177 = pneg %p57
        %p178 = pneg %p81
        %p179 = pneg %p78
        %p180 = pneg %p102
        %p181 = pneg %p99
        %p182 = pneg %p128
        %p183 = pneg %p125
        %s184 = sand.u32 %s115, 1
        %s185 = scalar_lea.sflag [#allocation3], %s184
        %s186 = sand.u32 %s115, 1
        %s187 = smul.addr %s186, 8
        %s188 = scalar_lea.vmem [#allocation2], %s187
        %p189 = scmp.lt.s32.totalorder %s18, 1
        %s190 = scalar_select %p189, %s18, 1
        %s191 = smul.addr %s190, 8
        %s192 = scalar_lea.vmem %s0, %s191
        %v193 = vld [vmem:[%s192] sm:$0xff]
        %v194 = vld [vmem:[%s1] sm:$0xff]
        %v195 = vld [vmem:[%s1 + $0x8] sm:$0xff]
        %v196 = vld [vmem:[%s1 + $0x10] sm:$0xff]
        %v197 = vld [vmem:[%s1 + $0x18] sm:$0xff]
        %vm198 = vcmask 261120
        %v200 = vsel %vm198, %v193, 0
        %202 = vmatprep.subr.mxu0 0.0
        %203 = vmatpush1.msra.mxu0 0.0
        %204 = vmatprep.subr.mxu0 0.0
        %205 = vmatpush1.msra.mxu0 0.0
        %206 = vmatprep.subr.mxu0 0.0
        %207 = vmatpush1.msra.mxu0 0.0
        %208 = vmatprep.subr.mxu0 0.0
        %209 = vmatpush1.msra.mxu0 0.0
        %210 = vmatprep.subr.mxu0 0.0
        %211 = vmatpush1.msra.mxu0 0.0
        %212 = vmatprep.subr.mxu0 0.0
        %213 = vmatpush1.msra.mxu0 0.0
        %214 = vmatprep.subr.mxu0 0.0
        %215 = vmatpush1.msra.mxu0 0.0
        %216 = vmatprep.subr.mxu0 0.0
        %217 = vmatpush1.msra.mxu0 0.0
        %218 = vmatprep.subr.mxu0 0.0
        %219 = vmatpush1.msra.mxu0 0.0
        %220 = vmatprep.subr.mxu0 0.0
        %221 = vmatpush1.msra.mxu0 0.0
        %222 = vmatprep.subr.mxu0 0.0
        %223 = vmatpush1.msra.mxu0 0.0
        %224 = vmatprep.subr.mxu0 0.0
        %225 = vmatpush1.msra.mxu0 0.0
        %226 = vmatprep.subr.mxu0 0.0
        %227 = vmatpush1.msra.mxu0 %v197
        %228 = vmatprep.subr.mxu0 0.0
        %229 = vmatpush1.msra.mxu0 %v196
        %230 = vmatprep.subr.mxu0 0.0
        %231 = vmatpush1.msra.mxu0 %v195
        %232 = vmatprep.subr.mxu0 0.0
        %233 = vmatpush1.msra.mxu0 %v194
        %234 = vmatprep.subr.mxu0 0.0
        %235 = vmatpush2.msra.mxu0 0.0
        %236 = vmatprep.subr.mxu0 0.0
        %237 = vmatpush2.msra.mxu0 0.0
        %238 = vmatprep.subr.mxu0 0.0
        %239 = vmatpush2.msra.mxu0 0.0
        %240 = vmatprep.subr.mxu0 0.0
        %241 = vmatpush2.msra.mxu0 0.0
        %242 = vmatprep.subr.mxu0 0.0
        %243 = vmatpush2.msra.mxu0 0.0
        %244 = vmatprep.subr.mxu0 0.0
        %245 = vmatpush2.msra.mxu0 0.0
        %246 = vmatprep.subr.mxu0 0.0
        %247 = vmatpush2.msra.mxu0 0.0
        %248 = vmatprep.subr.mxu0 0.0
        %249 = vmatpush2.msra.mxu0 0.0
        %250 = vmatprep.subr.mxu0 0.0
        %251 = vmatpush2.msra.mxu0 0.0
        %252 = vmatprep.subr.mxu0 0.0
        %253 = vmatpush2.msra.mxu0 0.0
        %254 = vmatprep.subr.mxu0 0.0
        %255 = vmatpush2.msra.mxu0 0.0
        %256 = vmatprep.subr.mxu0 0.0
        %257 = vmatpush2.msra.mxu0 0.0
        %258 = vmatprep.subr.mxu0 0.0
        %259 = vmatpush2.msra.mxu0 0.0
        %260 = vmatprep.subr.mxu0 0.0
        %261 = vmatpush2.msra.mxu0 0.0
        %262 = vmatprep.subr.mxu0 0.0
        %263 = vmatpush2.msra.mxu0 0.0
        %264 = vmatprep.subr.mxu0 0.0
        %265 = vmatpush2.msra.mxu0 0.0
        %266 = vmatprep.mubr.f32.mxu0 0.0
        %267 = vmatmul.mubr.f32.gmra.mxu0 %v200
        %v268 = vpop.f32.mrf.mxu0
        %v269 = vadd.f32 0.0, %v268
        %v270 = vpop.f32.mrf.mxu0
        %271 = vdwg.mxu0
        %v272 = vld [vmem:[%s2] sm:$0xff]
        %v273 = vld [vmem:[%s3] sm:$0x1]
        %v275 = vlaneseq
        %v276 = vshrl.u32 %v275, 7
        %v277 = vsub.s32 0, %v276
        %v278 = vrot.slane %v273, %v277
        %vm280 = vcmask 64512
        %v282 = vsel %vm280, %v269, 0
        %284 = vmatprep.subr.mxu0 0.0
        %285 = vmatpush1.msra.mxu0 0.0
        %286 = vmatprep.subr.mxu0 0.0
        %287 = vmatpush1.msra.mxu0 0.0
        %288 = vmatprep.subr.mxu0 0.0
        %289 = vmatpush1.msra.mxu0 0.0
        %290 = vmatprep.subr.mxu0 0.0
        %291 = vmatpush1.msra.mxu0 0.0
        %292 = vmatprep.subr.mxu0 0.0
        %293 = vmatpush1.msra.mxu0 0.0
        %294 = vmatprep.subr.mxu0 0.0
        %295 = vmatpush1.msra.mxu0 0.0
        %296 = vmatprep.subr.mxu0 0.0
        %297 = vmatpush1.msra.mxu0 0.0
        %298 = vmatprep.subr.mxu0 0.0
        %299 = vmatpush1.msra.mxu0 0.0
        %300 = vmatprep.subr.mxu0 0.0
        %301 = vmatpush1.msra.mxu0 0.0
        %302 = vmatprep.subr.mxu0 0.0
        %303 = vmatpush1.msra.mxu0 0.0
        %304 = vmatprep.subr.mxu0 0.0
        %305 = vmatpush1.msra.mxu0 0.0
        %306 = vmatprep.subr.mxu0 0.0
        %307 = vmatpush1.msra.mxu0 0.0
        %308 = vmatprep.subr.mxu0 0.0
        %309 = vmatpush1.msra.mxu0 0.0
        %310 = vmatprep.subr.mxu0 0.0
        %311 = vmatpush1.msra.mxu0 0.0
        %312 = vmatprep.subr.mxu0 0.0
        %313 = vmatpush1.msra.mxu0 0.0
        %314 = vmatprep.subr.mxu0 0.0
        %315 = vmatpush1.msra.mxu0 %v272
        %316 = vmatprep.subr.mxu0 0.0
        %317 = vmatpush2.msra.mxu0 0.0
        %318 = vmatprep.subr.mxu0 0.0
        %319 = vmatpush2.msra.mxu0 0.0
        %320 = vmatprep.subr.mxu0 0.0
        %321 = vmatpush2.msra.mxu0 0.0
        %322 = vmatprep.subr.mxu0 0.0
        %323 = vmatpush2.msra.mxu0 0.0
        %324 = vmatprep.subr.mxu0 0.0
        %325 = vmatpush2.msra.mxu0 0.0
        %326 = vmatprep.subr.mxu0 0.0
        %327 = vmatpush2.msra.mxu0 0.0
        %328 = vmatprep.subr.mxu0 0.0
        %329 = vmatpush2.msra.mxu0 0.0
        %330 = vmatprep.subr.mxu0 0.0
        %331 = vmatpush2.msra.mxu0 0.0
        %332 = vmatprep.subr.mxu0 0.0
        %333 = vmatpush2.msra.mxu0 0.0
        %334 = vmatprep.subr.mxu0 0.0
        %335 = vmatpush2.msra.mxu0 0.0
        %336 = vmatprep.subr.mxu0 0.0
        %337 = vmatpush2.msra.mxu0 0.0
        %338 = vmatprep.subr.mxu0 0.0
        %339 = vmatpush2.msra.mxu0 0.0
        %340 = vmatprep.subr.mxu0 0.0
        %341 = vmatpush2.msra.mxu0 0.0
        %342 = vmatprep.subr.mxu0 0.0
        %343 = vmatpush2.msra.mxu0 0.0
        %344 = vmatprep.subr.mxu0 0.0
        %345 = vmatpush2.msra.mxu0 0.0
        %346 = vmatprep.subr.mxu0 0.0
        %347 = vmatpush2.msra.mxu0 0.0
        %348 = vmatprep.mubr.f32.mxu0 0.0
        %349 = vmatmul.mubr.f32.gmra.mxu0 %v282
        %v350 = vpop.f32.mrf.mxu0
        %v351 = vadd.f32 %v278, %v350
        %v352 = vpop.f32.mrf.mxu0
        %353 = vdwg.mxu0
        %354 = vst [vmem:[%s188] sm:$0xff] %v351
        %s355 = sand.u32 %s115, 1
        %s356 = scalar_lea.sflag [#allocation3], %s355
        %s357 = sand.u32 %s115, 1
        %s358 = smul.addr %s357, 8
        %s359 = scalar_lea.vmem [#allocation2], %s358
        // Predicated region
        $region37: #{tpu_custom_call.1} parent=35 // pred_check
          %p360 = pneg %p125
        $region38: #{tpu_custom_call.1} parent=35 // pred_check_branch
          %362 = sbr.rel (%p360) target = $region40
        $region39: #{tpu_custom_call.1} parent=35 // pred_region
          %s364 = ssub.s32 128, 128
          %365 = vsyncadd %s356, %s364
          %s366 = smul.addr %s18, 128
          %s367 = scalar_lea.hbm %s4, %s366
          %s369 = sshll.u32 %s359, 4
          %s370 = int_to_ptr.vmem [resolvable:$true] %s369
          %372 = dma.vmem_to_hbm [thread:$0]  %s370, 128, %s367, %s356
        $region40: #{tpu_custom_call.1} parent=35 // pred_fallthru
          _
      $region36: #{tpu_custom_call.1} parent=5 // pred_fallthru
        _
      %p373 = scmp.le.s32.totalorder 2, %s13
      // Predicated region
      $region41: #{tpu_custom_call.1} parent=5 // pred_check
        %p374 = pneg %p373
      $region42: #{tpu_custom_call.1} parent=5 // pred_check_branch
        %376 = sbr.rel (%p374) target = $region44
      $region43: #{tpu_custom_call.1} parent=5 // pred_region
        %s377 = ssub.s32 %s13, 2
        // Predicated region
        $region45: #{tpu_custom_call.1} parent=43 // pred_check
          %p378 = pneg %p131
        $region46: #{tpu_custom_call.1} parent=43 // pred_check_branch
          %380 = sbr.rel (%p378) target = $region48
        $region47: #{tpu_custom_call.1} parent=43 // pred_region
          %s381 = sand.u32 %s116, 1
          %s382 = scalar_lea.sflag [#allocation3], %s381
          %s383 = sand.u32 %s116, 1
          %s384 = smul.addr %s383, 8
          %s385 = scalar_lea.vmem [#allocation2], %s384
          %386 = dma.done %s382, 128
        $region48: #{tpu_custom_call.1} parent=43 // pred_fallthru
          _
      $region44: #{tpu_custom_call.1} parent=5 // pred_fallthru
        _
    $region6: #{tpu_custom_call.1} parent=1 // loop_footer
      %s17 = sadd.s32 1, %s13
    $region7: #{tpu_custom_call.1} parent=1 // loop_footer_branch
      %12 = sbr.rel target = $region3
    $region8: #{tpu_custom_call.1} parent=1 // loop_exit
      _
    %387 = vsyncpa [#allocation3], 1
    %s388 = scalar_lea.sflag [#allocation3], 1
    %389 = vsyncpa %s388, 1

// kernel: tpu_custom_call.1
$region0: #{tpu_custom_call.1}
  #allocation0 [shape = 'u32[]', space=smem, size = 0x4, offset = 0x4, fixed_abs, tag = 'smem constant byte address 0x4 - core index']
  #allocation1 [shape = 'u32[144,128]{1,0:T(1,128)}', space=vmem, size = 0x12000, scoped, tag = 'internal scratch']
  %s0 = inlined_call_operand.vmem [shape: f32[16,32], index: 0, kind: input, shape index: {}]
  %s1 = inlined_call_operand.vmem [shape: f32[32,8], index: 1, kind: input, shape index: {}]
  %s2 = inlined_call_operand.vmem [shape: f32[8,128], index: 2, kind: input, shape index: {}]
  %s3 = inlined_call_operand.vmem [shape: f32[1,128], index: 3, kind: input, shape index: {}]
  %s4 = inlined_call_operand.hbm [shape: f32[16,128], index: 4, kind: output, shape index: {}]
  %s5 = sld [smem:[#allocation0]]
  $region49: #{tpu_custom_call.1} parent=0
    _
  %s7 = ssub.s32 1, %s5
  %s8 = scalar_select 0, %s7, %s5
  $region1: #{tpu_custom_call.1} parent=0
    #allocation2 [shape = 'u8[8192]{0}', space=vmem, size = 0x2000, scoped, tag = 'output window, operand 0']
    #allocation3 [shape = 's32[2]{0}', space=sflag, size = 0x8, scoped, tag = 'scoped memory for tpu_custom_call.1']
    %9 = vsyncpa [#allocation3], 0
    %s10 = scalar_lea.sflag [#allocation3], 1
    %11 = vsyncpa %s10, 0
    loop: start=0, step=1, limit=4
    $region2: #{tpu_custom_call.1} parent=1 // loop_pre_header
      _
    $region3: #{tpu_custom_call.1} parent=1 // loop_header
      %s13 = sphi 0, %s17
      %p14 = scmp.ge.s32.totalorder %s13, 4
      %s23 = sphi 0, %s25
      %s26 = sphi 0, %s23
      %s27 = sphi 0, %s26
      %s43 = sphi 0, %s27
      %s47 = sphi 0, %s47
      %s49 = sphi 0, %s47
      %s50 = sphi 0, %s49
      %s64 = sphi 0, %s50
      %s68 = sphi 0, %s68
      %s70 = sphi 0, %s68
      %s71 = sphi 0, %s70
      %s85 = sphi 0, %s71
      %s89 = sphi 0, %s89
      %s91 = sphi 0, %s89
      %s92 = sphi 0, %s91
      %s106 = sphi 0, %s92
      %s112 = sphi 0, %s114
      %s115 = sphi 0, %s112
      %s116 = sphi 0, %s115
      %s132 = sphi 0, %s116
    $region4: #{tpu_custom_call.1} parent=1 // loop_header_branch
      %16 = sbr.rel (%p14) target = $region8
    $region5: #{tpu_custom_call.1} parent=1 // loop_body
      %s18 = ssub.s32 %s13, 1
      %s19 = ssub.s32 %s13, 2
      %s20 = sadd.s32 %s13, 1
      %s21 = ssub.s32 %s13, %s20
      %p22 = scmp.eq.s32.totalorder %s21, 0
      %s24 = sadd.s32 %s23, 1
      %s25 = scalar_select %p22, %s23, %s24
      %p28 = pneg %p22
      %p29 = scmp.eq.s32.totalorder %s13, 1
      %p30 = por %p28, %p29
      %p31 = scmp.ne.s32.totalorder %s23, %s26
      %p32 = scmp.eq.s32.totalorder %s13, 0
      %p33 = por %p31, %p32
      %p34 = scmp.ne.s32.totalorder %s23, %s26
      %p35 = scmp.eq.s32.totalorder %s18, 1
      %p36 = por %p34, %p35
      %p37 = scmp.ne.s32.totalorder %s26, %s27
      %p38 = scmp.eq.s32.totalorder %s18, 0
      %p39 = por %p37, %p38
      %p40 = scmp.ne.s32.totalorder %s26, %s27
      %p41 = scmp.eq.s32.totalorder %s19, 1
      %p42 = por %p40, %p41
      %p44 = scmp.ne.s32.totalorder %s27, %s43
      %p45 = scmp.eq.s32.totalorder %s19, 0
      %p46 = por %p44, %p45
      %s48 = sadd.s32 %s47, 1
      %p51 = scmp.eq.s32.totalorder %s13, 1
      %p52 = scmp.ne.s32.totalorder %s47, %s49
      %p53 = scmp.eq.s32.totalorder %s13, 0
      %p54 = por %p52, %p53
      %p55 = scmp.ne.s32.totalorder %s47, %s49
      %p56 = scmp.eq.s32.totalorder %s18, 1
      %p57 = por %p55, %p56
      %p58 = scmp.ne.s32.totalorder %s49, %s50
      %p59 = scmp.eq.s32.totalorder %s18, 0
      %p60 = por %p58, %p59
      %p61 = scmp.ne.s32.totalorder %s49, %s50
      %p62 = scmp.eq.s32.totalorder %s19, 1
      %p63 = por %p61, %p62
      %p65 = scmp.ne.s32.totalorder %s50, %s64
      %p66 = scmp.eq.s32.totalorder %s19, 0
      %p67 = por %p65, %p66
      %s69 = sadd.s32 %s68, 1
      %p72 = scmp.eq.s32.totalorder %s13, 1
      %p73 = scmp.ne.s32.totalorder %s68, %s70
      %p74 = scmp.eq.s32.totalorder %s13, 0
      %p75 = por %p73, %p74
      %p76 = scmp.ne.s32.totalorder %s68, %s70
      %p77 = scmp.eq.s32.totalorder %s18, 1
      %p78 = por %p76, %p77
      %p79 = scmp.ne.s32.totalorder %s70, %s71
      %p80 = scmp.eq.s32.totalorder %s18, 0
      %p81 = por %p79, %p80
      %p82 = scmp.ne.s32.totalorder %s70, %s71
      %p83 = scmp.eq.s32.totalorder %s19, 1
      %p84 = por %p82, %p83
      %p86 = scmp.ne.s32.totalorder %s71, %s85
      %p87 = scmp.eq.s32.totalorder %s19, 0
      %p88 = por %p86, %p87
      %s90 = sadd.s32 %s89, 1
      %p93 = scmp.eq.s32.totalorder %s13, 1
      %p94 = scmp.ne.s32.totalorder %s89, %s91
      %p95 = scmp.eq.s32.totalorder %s13, 0
      %p96 = por %p94, %p95
      %p97 = scmp.ne.s32.totalorder %s89, %s91
      %p98 = scmp.eq.s32.totalorder %s18, 1
      %p99 = por %p97, %p98
      %p100 = scmp.ne.s32.totalorder %s91, %s92
      %p101 = scmp.eq.s32.totalorder %s18, 0
      %p102 = por %p100, %p101
      %p103 = scmp.ne.s32.totalorder %s91, %s92
      %p104 = scmp.eq.s32.totalorder %s19, 1
      %p105 = por %p103, %p104
      %p107 = scmp.ne.s32.totalorder %s92, %s106
      %p108 = scmp.eq.s32.totalorder %s19, 0
      %p109 = por %p107, %p108
      %s110 = ssub.s32 %s13, %s20
      %p111 = scmp.eq.s32.totalorder %s110, 0
      %s113 = sadd.s32 %s112, 1
      %s114 = scalar_select %p111, %s112, %s113
      %p117 = pneg %p111
      %p118 = scmp.eq.s32.totalorder %s13, 1
      %p119 = por %p117, %p118
      %p120 = scmp.ne.s32.totalorder %s112, %s115
      %p121 = scmp.eq.s32.totalorder %s13, 0
      %p122 = por %p120, %p121
      %p123 = scmp.ne.s32.totalorder %s112, %s115
      %p124 = scmp.eq.s32.totalorder %s18, 1
      %p125 = por %p123, %p124
      %p126 = scmp.ne.s32.totalorder %s115, %s116
      %p127 = scmp.eq.s32.totalorder %s18, 0
      %p128 = por %p126, %p127
      %p129 = scmp.ne.s32.totalorder %s115, %s116
      %p130 = scmp.eq.s32.totalorder %s19, 1
      %p131 = por %p129, %p130
      %p133 = scmp.ne.s32.totalorder %s116, %s132
      %p134 = scmp.eq.s32.totalorder %s19, 0
      %p135 = por %p133, %p134
      %p136 = scmp.le.s32.totalorder 1, %s13
      %p137 = scmp.lt.s32.totalorder %s13, 3
      %p138 = pnand %p136, %p137
      %p139 = pneg %p138
      // Predicated region
      $region9: #{tpu_custom_call.1} parent=5 // pred_check
        _
      $region10: #{tpu_custom_call.1} parent=5 // pred_check_branch
        %141 = sbr.rel (%p138) target = $region12
      $region11: #{tpu_custom_call.1} parent=5 // pred_region
        %s142 = ssub.s32 %s13, 1
        // Predicated region
        $region13: #{tpu_custom_call.1} parent=11 // pred_check
          %p143 = pneg %p60
        $region14: #{tpu_custom_call.1} parent=11 // pred_check_branch
          %145 = sbr.rel (%p143) target = $region16
        $region15: #{tpu_custom_call.1} parent=11 // pred_region
          _
        $region16: #{tpu_custom_call.1} parent=11 // pred_fallthru
          _
        // Predicated region
        $region17: #{tpu_custom_call.1} parent=11 // pred_check
          %p146 = pneg %p81
        $region18: #{tpu_custom_call.1} parent=11 // pred_check_branch
          %148 = sbr.rel (%p146) target = $region20
        $region19: #{tpu_custom_call.1} parent=11 // pred_region
          _
        $region20: #{tpu_custom_call.1} parent=11 // pred_fallthru
          _
        // Predicated region
        $region21: #{tpu_custom_call.1} parent=11 // pred_check
          %p149 = pneg %p102
        $region22: #{tpu_custom_call.1} parent=11 // pred_check_branch
          %151 = sbr.rel (%p149) target = $region24
        $region23: #{tpu_custom_call.1} parent=11 // pred_region
          _
        $region24: #{tpu_custom_call.1} parent=11 // pred_fallthru
          _
      $region12: #{tpu_custom_call.1} parent=5 // pred_fallthru
        _
      %p152 = scmp.lt.s32.totalorder %s13, 2
      // Predicated region
      $region25: #{tpu_custom_call.1} parent=5 // pred_check
        %p153 = pneg %p152
      $region26: #{tpu_custom_call.1} parent=5 // pred_check_branch
        %155 = sbr.rel (%p153) target = $region28
      $region27: #{tpu_custom_call.1} parent=5 // pred_region
        // Predicated region
        $region29: #{tpu_custom_call.1} parent=27 // pred_check
          %p156 = pneg %p33
        $region30: #{tpu_custom_call.1} parent=27 // pred_check_branch
          %158 = sbr.rel (%p156) target = $region32
        $region31: #{tpu_custom_call.1} parent=27 // pred_region
          %p159 = scmp.lt.s32.totalorder %s13, 1
          %s160 = scalar_select %p159, %s13, 1
          %s161 = smul.addr %s160, 8
          %s162 = scalar_lea.vmem %s0, %s161
        $region32: #{tpu_custom_call.1} parent=27 // pred_fallthru
          _
      $region28: #{tpu_custom_call.1} parent=5 // pred_fallthru
        _
      %p163 = scmp.le.s32.totalorder 1, %s13
      %p164 = scmp.lt.s32.totalorder %s13, 3
      %p165 = pnand %p163, %p164
      %p166 = pneg %p165
      // Predicated region
      $region33: #{tpu_custom_call.1} parent=5 // pred_check
        _
      $region34: #{tpu_custom_call.1} parent=5 // pred_check_branch
        %168 = sbr.rel (%p165) target = $region36
      $region35: #{tpu_custom_call.1} parent=5 // pred_region
        %s169 = ssub.s32 %s13, 1
        %p170 = scmp.lt.s32.totalorder %s18, 1
        %s171 = scalar_select %p170, %s18, 1
        %s172 = smul.addr %s171, 8
        %s173 = scalar_lea.vmem %s0, %s172
        %p174 = pneg %p39
        %p175 = pneg %p36
        %p176 = pneg %p60
        %p177 = pneg %p57
        %p178 = pneg %p81
        %p179 = pneg %p78
        %p180 = pneg %p102
        %p181 = pneg %p99
        %p182 = pneg %p128
        %p183 = pneg %p125
        %s184 = sand.u32 %s115, 1
        %s185 = scalar_lea.sflag [#allocation3], %s184
        %s186 = sand.u32 %s115, 1
        %s187 = smul.addr %s186, 8
        %s188 = scalar_lea.vmem [#allocation2], %s187
        %p189 = scmp.lt.s32.totalorder %s18, 1
        %s190 = scalar_select %p189, %s18, 1
        %s191 = smul.addr %s190, 8
        %s192 = scalar_lea.vmem %s0, %s191
        %v193 = vld [vmem:[%s192] sm:$0xff]
        %v194 = vld [vmem:[%s1] sm:$0xff]
        %v195 = vld [vmem:[%s1 + $0x8] sm:$0xff]
        %v196 = vld [vmem:[%s1 + $0x10] sm:$0xff]
        %v197 = vld [vmem:[%s1 + $0x18] sm:$0xff]
        %vm198 = vcmask 261120
        %v200 = vsel %vm198, %v193, 0
        %202 = vmatprep.subr.mxu0 0.0
        %203 = vmatpush1.msra.mxu0 0.0
        %204 = vmatprep.subr.mxu0 0.0
        %205 = vmatpush1.msra.mxu0 0.0
        %206 = vmatprep.subr.mxu0 0.0
        %207 = vmatpush1.msra.mxu0 0.0
        %208 = vmatprep.subr.mxu0 0.0
        %209 = vmatpush1.msra.mxu0 0.0
        %210 = vmatprep.subr.mxu0 0.0
        %211 = vmatpush1.msra.mxu0 0.0
        %212 = vmatprep.subr.mxu0 0.0
        %213 = vmatpush1.msra.mxu0 0.0
        %214 = vmatprep.subr.mxu0 0.0
        %215 = vmatpush1.msra.mxu0 0.0
        %216 = vmatprep.subr.mxu0 0.0
        %217 = vmatpush1.msra.mxu0 0.0
        %218 = vmatprep.subr.mxu0 0.0
        %219 = vmatpush1.msra.mxu0 0.0
        %220 = vmatprep.subr.mxu0 0.0
        %221 = vmatpush1.msra.mxu0 0.0
        %222 = vmatprep.subr.mxu0 0.0
        %223 = vmatpush1.msra.mxu0 0.0
        %224 = vmatprep.subr.mxu0 0.0
        %225 = vmatpush1.msra.mxu0 0.0
        %226 = vmatprep.subr.mxu0 0.0
        %227 = vmatpush1.msra.mxu0 %v197
        %228 = vmatprep.subr.mxu0 0.0
        %229 = vmatpush1.msra.mxu0 %v196
        %230 = vmatprep.subr.mxu0 0.0
        %231 = vmatpush1.msra.mxu0 %v195
        %232 = vmatprep.subr.mxu0 0.0
        %233 = vmatpush1.msra.mxu0 %v194
        %234 = vmatprep.subr.mxu0 0.0
        %235 = vmatpush2.msra.mxu0 0.0
        %236 = vmatprep.subr.mxu0 0.0
        %237 = vmatpush2.msra.mxu0 0.0
        %238 = vmatprep.subr.mxu0 0.0
        %239 = vmatpush2.msra.mxu0 0.0
        %240 = vmatprep.subr.mxu0 0.0
        %241 = vmatpush2.msra.mxu0 0.0
        %242 = vmatprep.subr.mxu0 0.0
        %243 = vmatpush2.msra.mxu0 0.0
        %244 = vmatprep.subr.mxu0 0.0
        %245 = vmatpush2.msra.mxu0 0.0
        %246 = vmatprep.subr.mxu0 0.0
        %247 = vmatpush2.msra.mxu0 0.0
        %248 = vmatprep.subr.mxu0 0.0
        %249 = vmatpush2.msra.mxu0 0.0
        %250 = vmatprep.subr.mxu0 0.0
        %251 = vmatpush2.msra.mxu0 0.0
        %252 = vmatprep.subr.mxu0 0.0
        %253 = vmatpush2.msra.mxu0 0.0
        %254 = vmatprep.subr.mxu0 0.0
        %255 = vmatpush2.msra.mxu0 0.0
        %256 = vmatprep.subr.mxu0 0.0
        %257 = vmatpush2.msra.mxu0 0.0
        %258 = vmatprep.subr.mxu0 0.0
        %259 = vmatpush2.msra.mxu0 0.0
        %260 = vmatprep.subr.mxu0 0.0
        %261 = vmatpush2.msra.mxu0 0.0
        %262 = vmatprep.subr.mxu0 0.0
        %263 = vmatpush2.msra.mxu0 0.0
        %264 = vmatprep.subr.mxu0 0.0
        %265 = vmatpush2.msra.mxu0 0.0
        %266 = vmatprep.mubr.f32.mxu0 0.0
        %267 = vmatmul.mubr.f32.gmra.mxu0 %v200
        %v268 = vpop.f32.mrf.mxu0
        %v269 = vadd.f32 0.0, %v268
        %v270 = vpop.f32.mrf.mxu0
        %271 = vdwg.mxu0
        %v272 = vld [vmem:[%s2] sm:$0xff]
        %v273 = vld [vmem:[%s3] sm:$0x1]
        %v275 = vlaneseq
        %v276 = vshrl.u32 %v275, 7
        %v277 = vsub.s32 0, %v276
        %v278 = vrot.slane %v273, %v277
        %vm280 = vcmask 64512
        %v282 = vsel %vm280, %v269, 0
        %284 = vmatprep.subr.mxu0 0.0
        %285 = vmatpush1.msra.mxu0 0.0
        %286 = vmatprep.subr.mxu0 0.0
        %287 = vmatpush1.msra.mxu0 0.0
        %288 = vmatprep.subr.mxu0 0.0
        %289 = vmatpush1.msra.mxu0 0.0
        %290 = vmatprep.subr.mxu0 0.0
        %291 = vmatpush1.msra.mxu0 0.0
        %292 = vmatprep.subr.mxu0 0.0
        %293 = vmatpush1.msra.mxu0 0.0
        %294 = vmatprep.subr.mxu0 0.0
        %295 = vmatpush1.msra.mxu0 0.0
        %296 = vmatprep.subr.mxu0 0.0
        %297 = vmatpush1.msra.mxu0 0.0
        %298 = vmatprep.subr.mxu0 0.0
        %299 = vmatpush1.msra.mxu0 0.0
        %300 = vmatprep.subr.mxu0 0.0
        %301 = vmatpush1.msra.mxu0 0.0
        %302 = vmatprep.subr.mxu0 0.0
        %303 = vmatpush1.msra.mxu0 0.0
        %304 = vmatprep.subr.mxu0 0.0
        %305 = vmatpush1.msra.mxu0 0.0
        %306 = vmatprep.subr.mxu0 0.0
        %307 = vmatpush1.msra.mxu0 0.0
        %308 = vmatprep.subr.mxu0 0.0
        %309 = vmatpush1.msra.mxu0 0.0
        %310 = vmatprep.subr.mxu0 0.0
        %311 = vmatpush1.msra.mxu0 0.0
        %312 = vmatprep.subr.mxu0 0.0
        %313 = vmatpush1.msra.mxu0 0.0
        %314 = vmatprep.subr.mxu0 0.0
        %315 = vmatpush1.msra.mxu0 %v272
        %316 = vmatprep.subr.mxu0 0.0
        %317 = vmatpush2.msra.mxu0 0.0
        %318 = vmatprep.subr.mxu0 0.0
        %319 = vmatpush2.msra.mxu0 0.0
        %320 = vmatprep.subr.mxu0 0.0
        %321 = vmatpush2.msra.mxu0 0.0
        %322 = vmatprep.subr.mxu0 0.0
        %323 = vmatpush2.msra.mxu0 0.0
        %324 = vmatprep.subr.mxu0 0.0
        %325 = vmatpush2.msra.mxu0 0.0
        %326 = vmatprep.subr.mxu0 0.0
        %327 = vmatpush2.msra.mxu0 0.0
        %328 = vmatprep.subr.mxu0 0.0
        %329 = vmatpush2.msra.mxu0 0.0
        %330 = vmatprep.subr.mxu0 0.0
        %331 = vmatpush2.msra.mxu0 0.0
        %332 = vmatprep.subr.mxu0 0.0
        %333 = vmatpush2.msra.mxu0 0.0
        %334 = vmatprep.subr.mxu0 0.0
        %335 = vmatpush2.msra.mxu0 0.0
        %336 = vmatprep.subr.mxu0 0.0
        %337 = vmatpush2.msra.mxu0 0.0
        %338 = vmatprep.subr.mxu0 0.0
        %339 = vmatpush2.msra.mxu0 0.0
        %340 = vmatprep.subr.mxu0 0.0
        %341 = vmatpush2.msra.mxu0 0.0
        %342 = vmatprep.subr.mxu0 0.0
        %343 = vmatpush2.msra.mxu0 0.0
        %344 = vmatprep.subr.mxu0 0.0
        %345 = vmatpush2.msra.mxu0 0.0
        %346 = vmatprep.subr.mxu0 0.0
        %347 = vmatpush2.msra.mxu0 0.0
        %348 = vmatprep.mubr.f32.mxu0 0.0
        %349 = vmatmul.mubr.f32.gmra.mxu0 %v282
        %v350 = vpop.f32.mrf.mxu0
        %v351 = vadd.f32 %v278, %v350
        %v352 = vpop.f32.mrf.mxu0
        %353 = vdwg.mxu0
        %354 = vst [vmem:[%s188] sm:$0xff] %v351
        %s355 = sand.u32 %s115, 1
        %s356 = scalar_lea.sflag [#allocation3], %s355
        %s357 = sand.u32 %s115, 1
        %s358 = smul.addr %s357, 8
        %s359 = scalar_lea.vmem [#allocation2], %s358
        // Predicated region
        $region37: #{tpu_custom_call.1} parent=35 // pred_check
          %p360 = pneg %p125
        $region38: #{tpu_custom_call.1} parent=35 // pred_check_branch
          %362 = sbr.rel (%p360) target = $region40
        $region39: #{tpu_custom_call.1} parent=35 // pred_region
          %s364 = ssub.s32 128, 128
          %365 = vsyncadd %s356, %s364
          %s366 = smul.addr %s18, 128
          %s367 = scalar_lea.hbm %s4, %s366
          %s369 = sshll.u32 %s359, 4
          %s370 = int_to_ptr.vmem [resolvable:$true] %s369
          %372 = dma.vmem_to_hbm [thread:$0]  %s370, 128, %s367, %s356
        $region40: #{tpu_custom_call.1} parent=35 // pred_fallthru
          _
      $region36: #{tpu_custom_call.1} parent=5 // pred_fallthru
        _
      %p373 = scmp.le.s32.totalorder 2, %s13
      // Predicated region
      $region41: #{tpu_custom_call.1} parent=5 // pred_check
        %p374 = pneg %p373
      $region42: #{tpu_custom_call.1} parent=5 // pred_check_branch
        %376 = sbr.rel (%p374) target = $region44
      $region43: #{tpu_custom_call.1} parent=5 // pred_region
        %s377 = ssub.s32 %s13, 2
        // Predicated region
        $region45: #{tpu_custom_call.1} parent=43 // pred_check
          %p378 = pneg %p131
        $region46: #{tpu_custom_call.1} parent=43 // pred_check_branch
          %380 = sbr.rel (%p378) target = $region48
        $region47: #{tpu_custom_call.1} parent=43 // pred_region
          %s381 = sand.u32 %s116, 1
          %s382 = scalar_lea.sflag [#allocation3], %s381
          %s383 = sand.u32 %s116, 1
          %s384 = smul.addr %s383, 8
          %s385 = scalar_lea.vmem [#allocation2], %s384
          %386 = dma.done %s382, 128
        $region48: #{tpu_custom_call.1} parent=43 // pred_fallthru
          _
      $region44: #{tpu_custom_call.1} parent=5 // pred_fallthru
        _
    $region6: #{tpu_custom_call.1} parent=1 // loop_footer
      %s17 = sadd.s32 1, %s13
    $region7: #{tpu_custom_call.1} parent=1 // loop_footer_branch
      %12 = sbr.rel target = $region3
    $region8: #{tpu_custom_call.1} parent=1 // loop_exit
      _
    %387 = vsyncpa [#allocation3], 1
    %s388 = scalar_lea.sflag [#allocation3], 1
    %389 = vsyncpa %s388, 1

</llo_original>
